<compile_context>
chip_gen: v7x
topology: tpu7x:2x2x1
jax: 0.10.0
libtpu: 0.0.40
codegen_flags: <defaults>
</compile_context>

<pallas_src>
from functools import partial

import numpy as np
import jax
import jax.numpy as jnp
from jax import lax
from jax.experimental import pallas as pl
from jax.experimental.pallas import tpu as pltpu


# ----------------------------- Pallas kernel --------------------------------

def relu_admm_kernel(wt_ref, x_ref, b_ref, lb_ref, ub_ref, o_ref, xpad_ref,
                     *, num_iters):
    B, N = x_ref.shape

    # Zero the (8,128)-aligned state scratch, then drop the (possibly
    # unaligned) input block into its top-left corner.  Padded lanes stay
    # exactly 0 through every iteration (W pad rows/cols = 0, b pad = 0,
    # lb/ub pad = -inf/+inf).
    xpad_ref[...] = jnp.zeros_like(xpad_ref)
    xpad_ref[0:B, 0:N] = x_ref[...]

    b = b_ref[...]
    lb = lb_ref[...]
    ub = ub_ref[...]

    def step(_, x):
        # bf16 (or f32) weights, f32 accumulate on the MXU; state stays f32.
        y = jnp.dot(x.astype(wt_ref.dtype), wt_ref[...],
                    preferred_element_type=jnp.float32) + b
        return jnp.clip(y, lb, ub)

    # Static, small trip count -> fully unroll for LLO scheduling visibility.
    xk = lax.fori_loop(0, num_iters, step, xpad_ref[...], unroll=True)
    o_ref[...] = xk[0:B, 0:N]


# ----------------------- one-time parameter preparation ----------------------

def prepare_params(W, b, l, u, nx, nc, w_dtype=jnp.bfloat16):
    """Hoisted setup: pad N to a multiple of 128, transpose W for the row-vector
    formulation, build full-length clamp vectors, cast to device arrays."""
    N = W.shape[0]
    N_pad = ((N + 127) // 128) * 128

    W_pad = np.zeros((N_pad, N_pad), dtype=np.float32)
    W_pad[:N, :N] = W
    b_pad = np.zeros((N_pad,), dtype=np.float32)
    b_pad[:N] = b
    lb = np.full((N_pad,), -np.inf, dtype=np.float32)
    ub = np.full((N_pad,), np.inf, dtype=np.float32)
    lb[nx:nx + nc] = l
    ub[nx:nx + nc] = u

    return {
        "Wt": jnp.asarray(W_pad.T, dtype=w_dtype),   # (N_pad, N_pad), x_row @ W^T
        "b": jnp.asarray(b_pad)[None, :],            # (1, N_pad) f32
        "lb": jnp.asarray(lb)[None, :],               # (1, N_pad) f32
        "ub": jnp.asarray(ub)[None, :],               # (1, N_pad) f32
        "N": N,
        "N_pad": N_pad,
    }


# ------------------------------- hot path ------------------------------------

@partial(jax.jit, static_argnames=("num_iters",))
def relu_layer_forward(x, Wt, b, lb, ub, *, num_iters=1):
    """num_iters applications of y = clamp_slice(W @ x + b).  num_iters=1 is the
    module's forward().  x: (N,) or (B, N) — rows are independent states/QPs."""
    squeeze = (x.ndim == 1)
    x2 = (x[None, :] if squeeze else x).astype(jnp.float32)
    B, N = x2.shape
    N_pad = Wt.shape[0]
    B_pad = max(8, ((B + 7) // 8) * 8)        # sublane-align the row batch

    def full(shape):
        return pl.BlockSpec(shape, lambda: (0,) * len(shape))

    w_bytes = int(jnp.dtype(Wt.dtype).itemsize) * N_pad * N_pad
    cost = pl.CostEstimate(
        flops=2 * B_pad * N_pad * N_pad * num_iters,
        transcendentals=0,
        bytes_accessed=w_bytes + 4 * (2 * B * N + 3 * N_pad),
    )

    # Only raise the scoped-VMEM limit when the resident footprint needs it
    # (generation defaults: 16 MiB v5e, 32 MiB v6e/v7x; v7x physical is 64 MiB).
    vmem_bytes = w_bytes + 4 * (B_pad * N_pad + 2 * B * N + 3 * N_pad)
    extra = {}
    if vmem_bytes > (12 << 20):
        extra["compiler_params"] = pltpu.CompilerParams(
            vmem_limit_bytes=min(int(vmem_bytes * 1.5), 64 << 20))

    out = pl.pallas_call(
        partial(relu_admm_kernel, num_iters=num_iters),
        out_shape=jax.ShapeDtypeStruct((B, N), jnp.float32),
        grid=(),
        in_specs=[
            full((N_pad, N_pad)),   # W^T  (VMEM-resident across all iterations)
            full((B, N)),           # x    (natural shape; padded in-kernel)
            full((1, N_pad)),       # b
            full((1, N_pad)),       # lb
            full((1, N_pad)),       # ub
        ],
        out_specs=full((B, N)),
        scratch_shapes=[pltpu.VMEM((B_pad, N_pad), jnp.float32)],
        cost_estimate=cost,
        **extra,
    )(Wt, x2, b, lb, ub)

    return out[0] if squeeze else out


# ----------------------- deterministic parameter setup ----------------------
# (mirrors Settings / QP / ReLU_Layer.__init__ in numpy float64; glue only)

def setup_rhos(rho=0.1, rho_min=1e-6, rho_max=1e6, tol=5.0, adaptive=True):
    rhos = [rho]
    if adaptive:
        r = rho / tol
        while r >= rho_min:
            rhos.append(r)
            r = r / tol
        r = rho * tol
        while r <= rho_max:
            rhos.append(r)
            r = r * tol
        rhos.sort()
    return np.asarray(rhos, dtype=np.float64)


def setup_matrices(H, g, A, l, u, rho_scalar, sigma=1e-6, eq_tol=1e-6):
    nx, nc = H.shape[0], A.shape[0]
    rho_vec = rho_scalar * np.ones(nc)
    rho_vec[(u - l) <= eq_tol] = rho_scalar * 1e3
    R = np.diag(rho_vec)
    R_inv = np.diag(1.0 / rho_vec)
    K = np.linalg.inv(H + sigma * np.eye(nx) + A.T @ (R @ A))
    Ix = np.eye(nx)
    Ic = np.eye(nc)
    W = np.concatenate(
        [
            np.concatenate(
                [K @ (sigma * Ix - A.T @ (R @ A)), 2 * K @ A.T @ R, -K @ A.T], axis=1),
            np.concatenate(
                [A @ K @ (sigma * Ix - A.T @ (R @ A)) + A,
                 2 * A @ K @ A.T @ R - Ic,
                 -A @ K @ A.T + R_inv], axis=1),
            np.concatenate([R @ A, -R, Ic], axis=1),
        ],
        axis=0,
    )
    B = np.concatenate([-K, -A @ K, np.zeros((nc, nx))], axis=0)
    b = B @ g
    return W, B, b


def xla_reference(x0, params, num_iters):
    """Plain-XLA (non-Pallas) implementation of the EXACT precision pipeline the
    kernel uses (same-dtype W, f32 accumulate, f32 state).  Used to validate the
    reduced-precision bf16-W fast path independently of f64 convergence margins."""
    N = x0.shape[0]
    N_pad = params["Wt"].shape[0]
    x = jnp.zeros((1, N_pad), jnp.float32).at[0, :N].set(x0.astype(jnp.float32))
    for _ in range(num_iters):
        y = jnp.dot(x.astype(params["Wt"].dtype), params["Wt"],
                    preferred_element_type=jnp.float32) + params["b"]
        x = jnp.clip(y, params["lb"], params["ub"])
    return np.asarray(x[0, :N])


# ----------------------------------- main ------------------------------------

if __name__ == "__main__":
    nx, nc = 32, 16
    N = nx + 2 * nc

    key = jax.random.PRNGKey(0)
    k1, k2, k3, k4, k5, k6 = jax.random.split(key, 6)

    # Deterministic synthetic QP data (H SPD, l <= u).
    M = np.asarray(jax.random.normal(k1, (nx, nx)), dtype=np.float64)
    H = M @ M.T + nx * np.eye(nx)
    g = np.asarray(jax.random.normal(k2, (nx,)), dtype=np.float64)
    A = np.asarray(jax.random.normal(k3, (nc, nx)), dtype=np.float64)
    l_np = np.asarray(jax.random.normal(k4, (nc,)), dtype=np.float64) - 1.0
    u_np = l_np + np.abs(np.asarray(jax.random.normal(k5, (nc,)), dtype=np.float64)) + 0.1

    rhos = setup_rhos()
    idx = int(np.searchsorted(rhos, 0.1))  # the rho == settings.rho entry
    W_np, B_np, b_np = setup_matrices(H, g, A, l_np, u_np, float(rhos[idx]))

    # Input state vector [x; z; lambda] of length nx + 2*nc.
    x0 = jax.random.normal(k6, (N,), dtype=jnp.float32)
    x0_np = np.asarray(x0)

    # ---------------- f32-weight path: strict module semantics ---------------
    p32 = prepare_params(W_np, b_np, l_np, u_np, nx, nc, w_dtype=jnp.float32)

    y1 = relu_layer_forward(x0, p32["Wt"], p32["b"], p32["lb"], p32["ub"],
                            num_iters=1)
    y1 = jax.block_until_ready(y1)
    y_ref = W_np.astype(np.float32) @ x0_np + b_np.astype(np.float32)
    y_ref[nx:nx + nc] = np.clip(y_ref[nx:nx + nc],
                                l_np.astype(np.float32), u_np.astype(np.float32))
    np.testing.assert_allclose(np.asarray(y1), y_ref, rtol=1e-4, atol=1e-4)

    # Batched rows (independent states) stream through the weight-stationary MXU.
    xb = jax.random.normal(jax.random.PRNGKey(7), (4, N), dtype=jnp.float32)
    yb = jax.block_until_ready(
        relu_layer_forward(xb, p32["Wt"], p32["b"], p32["lb"], p32["ub"],
                           num_iters=1))
    yb_ref = np.asarray(xb) @ W_np.T.astype(np.float32) + b_np.astype(np.float32)
    yb_ref[:, nx:nx + nc] = np.clip(yb_ref[:, nx:nx + nc],
                                    l_np.astype(np.float32),
                                    u_np.astype(np.float32))
    np.testing.assert_allclose(np.asarray(yb), yb_ref, rtol=1e-4, atol=1e-4)

    # Fused K-iteration run (W stays VMEM-resident for all unrolled steps).
    K = 20
    yK = jax.block_until_ready(
        relu_layer_forward(x0, p32["Wt"], p32["b"], p32["lb"], p32["ub"],
                           num_iters=K))
    xk = x0_np.astype(np.float64)
    for _ in range(K):
        t = W_np @ xk + b_np
        t[nx:nx + nc] = np.clip(t[nx:nx + nc], l_np, u_np)
        xk = t
    np.testing.assert_allclose(np.asarray(yK), xk, rtol=1e-2, atol=1e-2)

    # ------------- bf16-weight fast path (default): MXU-native ---------------
    p16 = prepare_params(W_np, b_np, l_np, u_np, nx, nc)   # w_dtype=bf16

    y1b = jax.block_until_ready(
        relu_layer_forward(x0, p16["Wt"], p16["b"], p16["lb"], p16["ub"],
                           num_iters=1))
    np.testing.assert_allclose(np.asarray(y1b), xla_reference(x0, p16, 1),
                               rtol=2e-3, atol=2e-3)

    yKb = jax.block_until_ready(
        relu_layer_forward(x0, p16["Wt"], p16["b"], p16["lb"], p16["ub"],
                           num_iters=K))
    np.testing.assert_allclose(np.asarray(yKb), xla_reference(x0, p16, K),
                               rtol=1e-2, atol=1e-2)

    print("KERNEL_OK")
</pallas_src>

<mosaic_0001>
module attributes {stable_mosaic.version = 11 : i64} {
  func.func @relu_admm_kernel(%arg0: memref<128x128xf32, #tpu.memory_space<vmem>>, %arg1: memref<1x64xf32, #tpu.memory_space<vmem>>, %arg2: memref<1x128xf32, #tpu.memory_space<vmem>>, %arg3: memref<1x128xf32, #tpu.memory_space<vmem>>, %arg4: memref<1x128xf32, #tpu.memory_space<vmem>>, %arg5: memref<1x64xf32, #tpu.memory_space<vmem>>, %arg6: memref<8x128xf32, #tpu.memory_space<vmem>>) attributes {dimension_semantics = [], scalar_prefetch = 0 : i64, scratch_operands = 1 : i64, tpu.core_type = #tpu.core_type<tc>} {
    %cst = arith.constant 0.000000e+00 : f32
    %0 = vector.broadcast %cst : f32 to vector<8x128xf32>
    %c0 = arith.constant 0 : index
    %c0_0 = arith.constant 0 : index
    %1 = vector.load %arg6[%c0, %c0_0] : memref<8x128xf32, #tpu.memory_space<vmem>>, vector<8x128xf32>
    tpu.vector_store %arg6[%c0, %c0_0], %0 {strides = array<i32>} : memref<8x128xf32, #tpu.memory_space<vmem>>, vector<8x128xf32>,
    %c0_1 = arith.constant 0 : index
    %c0_2 = arith.constant 0 : index
    %2 = vector.load %arg1[%c0_1, %c0_2] : memref<1x64xf32, #tpu.memory_space<vmem>>, vector<1x64xf32>
    %c0_3 = arith.constant 0 : index
    %c0_4 = arith.constant 0 : index
    %3 = vector.load %arg6[%c0_3, %c0_4] : memref<8x128xf32, #tpu.memory_space<vmem>>, vector<1x64xf32>
    tpu.vector_store %arg6[%c0_3, %c0_4], %2 {strides = array<i32>} : memref<8x128xf32, #tpu.memory_space<vmem>>, vector<1x64xf32>,
    %c0_5 = arith.constant 0 : index
    %c0_6 = arith.constant 0 : index
    %4 = vector.load %arg2[%c0_5, %c0_6] : memref<1x128xf32, #tpu.memory_space<vmem>>, vector<1x128xf32>
    %c0_7 = arith.constant 0 : index
    %c0_8 = arith.constant 0 : index
    %5 = vector.load %arg3[%c0_7, %c0_8] : memref<1x128xf32, #tpu.memory_space<vmem>>, vector<1x128xf32>
    %c0_9 = arith.constant 0 : index
    %c0_10 = arith.constant 0 : index
    %6 = vector.load %arg4[%c0_9, %c0_10] : memref<1x128xf32, #tpu.memory_space<vmem>>, vector<1x128xf32>
    %c0_11 = arith.constant 0 : index
    %c0_12 = arith.constant 0 : index
    %7 = vector.load %arg6[%c0_11, %c0_12] : memref<8x128xf32, #tpu.memory_space<vmem>>, vector<8x128xf32>
    %c0_i32 = arith.constant 0 : i32
    %c0_13 = arith.constant 0 : index
    %c0_14 = arith.constant 0 : index
    %8 = vector.load %arg0[%c0_13, %c0_14] : memref<128x128xf32, #tpu.memory_space<vmem>>, vector<128x128xf32>
    %cst_15 = arith.constant dense<0.000000e+00> : vector<8x128xf32>
    %9 = tpu.matmul %7, %8, %cst_15 {dimension_numbers = #tpu.dot_dimension_numbers<[1], [0], [0], [1], [0, 0, 1, 1], [], []>} : vector<8x128xf32>, vector<128x128xf32>, vector<8x128xf32> -> vector<8x128xf32>
    %10 = vector.broadcast %4 : vector<1x128xf32> to vector<8x128xf32>
    %11 = arith.addf %9, %10 : vector<8x128xf32>
    %12 = vector.broadcast %5 : vector<1x128xf32> to vector<8x128xf32>
    %13 = arith.maximumf %12, %11 : vector<8x128xf32>
    %14 = vector.broadcast %6 : vector<1x128xf32> to vector<8x128xf32>
    %15 = arith.minimumf %14, %13 : vector<8x128xf32>
    %16 = vector.extract_strided_slice %15 {offsets = [0, 0], sizes = [1, 64], strides = [1, 1]} : vector<8x128xf32> to vector<1x64xf32>
    %c0_16 = arith.constant 0 : index
    %c0_17 = arith.constant 0 : index
    %17 = vector.load %arg5[%c0_16, %c0_17] : memref<1x64xf32, #tpu.memory_space<vmem>>, vector<1x64xf32>
    tpu.vector_store %arg5[%c0_16, %c0_17], %16 {strides = array<i32>} : memref<1x64xf32, #tpu.memory_space<vmem>>, vector<1x64xf32>,
    return
  }
}

</mosaic_0001>

<llo_original>
// kernel: relu_layer_forward.1
$region0: #{relu_layer_forward.1}
  #allocation0 [shape = 'u32[]', space=smem, size = 0x4, offset = 0x4, fixed_abs, tag = 'smem constant byte address 0x4 - core index']
  #allocation1 [shape = 'u32[144,128]{1,0:T(1,128)}', space=vmem, size = 0x12000, scoped, tag = 'internal scratch']
  #allocation2 [shape = 'f32[8,128]{1,0:T(8,128)}', space=vmem, size = 0x1000, scoped, tag = 'scratch operand']
  %s0 = inlined_call_operand.hbm [shape: f32[128,128], index: 0, kind: input, shape index: {}]
  %s1 = inlined_call_operand.vmem [shape: f32[1,64], index: 1, kind: input, shape index: {}]
  %s2 = inlined_call_operand.vmem [shape: f32[1,128], index: 2, kind: input, shape index: {}]
  %s3 = inlined_call_operand.vmem [shape: f32[1,128], index: 3, kind: input, shape index: {}]
  %s4 = inlined_call_operand.vmem [shape: f32[1,128], index: 4, kind: input, shape index: {}]
  %s5 = inlined_call_operand.hbm [shape: f32[1,64], index: 5, kind: output, shape index: {}]
  %s6 = sld [smem:[#allocation0]]
  $region34: #{relu_layer_forward.1} parent=0
    _
  %s8 = ssub.s32 1, %s6
  %s9 = scalar_select 0, %s8, %s6
  $region1: #{relu_layer_forward.1} parent=0
    #allocation3 [shape = 'u8[65536]{0}', space=vmem, size = 0x10000, scoped, tag = 'input window, operand 0, single buffered']
    #allocation4 [shape = 's32[1]{0}', space=sflag, size = 0x4, scoped, tag = 'scoped memory for relu_layer_forward.1']
    #allocation5 [shape = 's32[1]{0}', space=sflag, size = 0x4, scoped, tag = 'scoped memory for relu_layer_forward.1']
    #allocation6 [shape = 'u8[512]{0}', space=vmem, size = 0x400, scoped, tag = 'output window, operand 0, single buffered']
    %10 = vsyncpa [#allocation4], 0
    %11 = vsyncpa [#allocation5], 0
    // Predicated region
    $region2: #{relu_layer_forward.1} parent=1 // pred_check
      _
    $region3: #{relu_layer_forward.1} parent=1 // pred_check_branch
      %13 = sbr.rel (0) target = $region5
    $region4: #{relu_layer_forward.1} parent=1 // pred_region
      %s15 = ssub.s32 2048, 2048
      %16 = vsyncadd [#allocation4], %s15
      %s17 = sshll.u32 [#allocation3], 4
      %s18 = int_to_ptr.vmem [resolvable:$true] %s17
      %23 = dma.hbm_to_vmem [thread:$0]  %s0, 2048, %s18, [#allocation4], 128, 128, 8
    $region5: #{relu_layer_forward.1} parent=1 // pred_fallthru
      _
    // Predicated region
    $region6: #{relu_layer_forward.1} parent=1 // pred_check
      _
    $region7: #{relu_layer_forward.1} parent=1 // pred_check_branch
      %25 = sbr.rel (0) target = $region9
    $region8: #{relu_layer_forward.1} parent=1 // pred_region
      _
    $region9: #{relu_layer_forward.1} parent=1 // pred_fallthru
      _
    // Predicated region
    $region10: #{relu_layer_forward.1} parent=1 // pred_check
      _
    $region11: #{relu_layer_forward.1} parent=1 // pred_check_branch
      %27 = sbr.rel (0) target = $region13
    $region12: #{relu_layer_forward.1} parent=1 // pred_region
      _
    $region13: #{relu_layer_forward.1} parent=1 // pred_fallthru
      _
    // Predicated region
    $region14: #{relu_layer_forward.1} parent=1 // pred_check
      _
    $region15: #{relu_layer_forward.1} parent=1 // pred_check_branch
      %29 = sbr.rel (0) target = $region17
    $region16: #{relu_layer_forward.1} parent=1 // pred_region
      _
    $region17: #{relu_layer_forward.1} parent=1 // pred_fallthru
      _
    // Predicated region
    $region18: #{relu_layer_forward.1} parent=1 // pred_check
      _
    $region19: #{relu_layer_forward.1} parent=1 // pred_check_branch
      %31 = sbr.rel (0) target = $region21
    $region20: #{relu_layer_forward.1} parent=1 // pred_region
      _
    $region21: #{relu_layer_forward.1} parent=1 // pred_fallthru
      _
    // Predicated region
    $region22: #{relu_layer_forward.1} parent=1 // pred_check
      _
    $region23: #{relu_layer_forward.1} parent=1 // pred_check_branch
      %33 = sbr.rel (0) target = $region25
    $region24: #{relu_layer_forward.1} parent=1 // pred_region
      %34 = dma.done [#allocation4], 2048
    $region25: #{relu_layer_forward.1} parent=1 // pred_fallthru
      _
    %35 = vst [vmem:[#allocation2] sm:$0xff] 0.0
    %v36 = vld [vmem:[%s1] sm:$0x1]
    %vm37 = vcmask 516096
    %38 = vst.msk [vmem:[#allocation2] sm:$0x1] %vm37, %v36
    %v39 = vld [vmem:[%s2] sm:$0x1]
    %v40 = vld [vmem:[%s3] sm:$0x1]
    %v41 = vld [vmem:[%s4] sm:$0x1]
    %v42 = vld [vmem:[#allocation2] sm:$0xff]
    %v43 = vld [vmem:[#allocation3] sm:$0xff]
    %v44 = vld [vmem:[#allocation3 + $0x8] sm:$0xff]
    %v45 = vld [vmem:[#allocation3 + $0x10] sm:$0xff]
    %v46 = vld [vmem:[#allocation3 + $0x18] sm:$0xff]
    %v47 = vld [vmem:[#allocation3 + $0x20] sm:$0xff]
    %v48 = vld [vmem:[#allocation3 + $0x28] sm:$0xff]
    %v49 = vld [vmem:[#allocation3 + $0x30] sm:$0xff]
    %v50 = vld [vmem:[#allocation3 + $0x38] sm:$0xff]
    %v51 = vld [vmem:[#allocation3 + $0x40] sm:$0xff]
    %v52 = vld [vmem:[#allocation3 + $0x48] sm:$0xff]
    %v53 = vld [vmem:[#allocation3 + $0x50] sm:$0xff]
    %v54 = vld [vmem:[#allocation3 + $0x58] sm:$0xff]
    %v55 = vld [vmem:[#allocation3 + $0x60] sm:$0xff]
    %v56 = vld [vmem:[#allocation3 + $0x68] sm:$0xff]
    %v57 = vld [vmem:[#allocation3 + $0x70] sm:$0xff]
    %v58 = vld [vmem:[#allocation3 + $0x78] sm:$0xff]
    %v60 = vlaneseq
    %v61 = vshrl.u32 %v60, 7
    %v62 = vsub.s32 0, %v61
    %v63 = vrot.slane %v39, %v62
    %65 = vmatprep.subr.mxu0 0.0
    %66 = vmatpush1.msra.mxu0 %v43
    %67 = vmatprep.subr.mxu0 0.0
    %68 = vmatpush1.msra.mxu0 %v44
    %69 = vmatprep.subr.mxu0 0.0
    %70 = vmatpush1.msra.mxu0 %v45
    %71 = vmatprep.subr.mxu0 0.0
    %72 = vmatpush1.msra.mxu0 %v46
    %73 = vmatprep.subr.mxu0 0.0
    %74 = vmatpush1.msra.mxu0 %v47
    %75 = vmatprep.subr.mxu0 0.0
    %76 = vmatpush1.msra.mxu0 %v48
    %77 = vmatprep.subr.mxu0 0.0
    %78 = vmatpush1.msra.mxu0 %v49
    %79 = vmatprep.subr.mxu0 0.0
    %80 = vmatpush1.msra.mxu0 %v50
    %81 = vmatprep.subr.mxu0 0.0
    %82 = vmatpush1.msra.mxu0 %v51
    %83 = vmatprep.subr.mxu0 0.0
    %84 = vmatpush1.msra.mxu0 %v52
    %85 = vmatprep.subr.mxu0 0.0
    %86 = vmatpush1.msra.mxu0 %v53
    %87 = vmatprep.subr.mxu0 0.0
    %88 = vmatpush1.msra.mxu0 %v54
    %89 = vmatprep.subr.mxu0 0.0
    %90 = vmatpush1.msra.mxu0 %v55
    %91 = vmatprep.subr.mxu0 0.0
    %92 = vmatpush1.msra.mxu0 %v56
    %93 = vmatprep.subr.mxu0 0.0
    %94 = vmatpush1.msra.mxu0 %v57
    %95 = vmatprep.subr.mxu0 0.0
    %96 = vmatpush1.msra.mxu0 %v58
    %97 = vmatprep.subr.mxu0 0.0
    %98 = vmatpush1.msra.mxu0 0.0
    %99 = vmatprep.subr.mxu0 0.0
    %100 = vmatpush1.msra.mxu0 0.0
    %101 = vmatprep.subr.mxu0 0.0
    %102 = vmatpush1.msra.mxu0 0.0
    %103 = vmatprep.subr.mxu0 0.0
    %104 = vmatpush1.msra.mxu0 0.0
    %105 = vmatprep.subr.mxu0 0.0
    %106 = vmatpush1.msra.mxu0 0.0
    %107 = vmatprep.subr.mxu0 0.0
    %108 = vmatpush1.msra.mxu0 0.0
    %109 = vmatprep.subr.mxu0 0.0
    %110 = vmatpush1.msra.mxu0 0.0
    %111 = vmatprep.subr.mxu0 0.0
    %112 = vmatpush1.msra.mxu0 0.0
    %113 = vmatprep.subr.mxu0 0.0
    %114 = vmatpush1.msra.mxu0 0.0
    %115 = vmatprep.subr.mxu0 0.0
    %116 = vmatpush1.msra.mxu0 0.0
    %117 = vmatprep.subr.mxu0 0.0
    %118 = vmatpush1.msra.mxu0 0.0
    %119 = vmatprep.subr.mxu0 0.0
    %120 = vmatpush1.msra.mxu0 0.0
    %121 = vmatprep.subr.mxu0 0.0
    %122 = vmatpush1.msra.mxu0 0.0
    %123 = vmatprep.subr.mxu0 0.0
    %124 = vmatpush1.msra.mxu0 0.0
    %125 = vmatprep.subr.mxu0 0.0
    %126 = vmatpush1.msra.mxu0 0.0
    %127 = vmatprep.subr.mxu0 0.0
    %128 = vmatpush1.msra.mxu0 0.0
    %129 = vmatprep.mubr.f32.mxu0 0.0
    %130 = vmatmul.mubr.f32.gmra.mrb[0].mxu0 %v42
    %v131 = vpop.f32.mrb[0].mxu0
    %v132 = vadd.f32 %v63, %v131
    %v133 = vpop.f32.mrb[0].mxu0
    %134 = vdwg.mxu0
    %v136 = vlaneseq
    %v137 = vshrl.u32 %v136, 7
    %v138 = vsub.s32 0, %v137
    %v139 = vrot.slane %v40, %v138
    %v141 = vmax.f32 %v139, %v132
    %v143 = vlaneseq
    %v144 = vshrl.u32 %v143, 7
    %v145 = vsub.s32 0, %v144
    %v146 = vrot.slane %v41, %v145
    %v148 = vmin.f32 %v146, %v141
    %149 = vst.msk [vmem:[#allocation6] sm:$0x1] %vm37, %v148
    // Predicated region
    $region26: #{relu_layer_forward.1} parent=1 // pred_check
      _
    $region27: #{relu_layer_forward.1} parent=1 // pred_check_branch
      %151 = sbr.rel (0) target = $region29
    $region28: #{relu_layer_forward.1} parent=1 // pred_region
      %s153 = ssub.s32 16, 16
      %154 = vsyncadd [#allocation5], %s153
      %s156 = sshll.u32 [#allocation6], 4
      %s157 = int_to_ptr.vmem [resolvable:$true] %s156
      %159 = dma.vmem_to_hbm [thread:$0]  %s157, 16, %s5, [#allocation5]
    $region29: #{relu_layer_forward.1} parent=1 // pred_fallthru
      _
    // Predicated region
    $region30: #{relu_layer_forward.1} parent=1 // pred_check
      _
    $region31: #{relu_layer_forward.1} parent=1 // pred_check_branch
      %161 = sbr.rel (0) target = $region33
    $region32: #{relu_layer_forward.1} parent=1 // pred_region
      %162 = dma.done [#allocation5], 16
    $region33: #{relu_layer_forward.1} parent=1 // pred_fallthru
      _
    %163 = vsyncpa [#allocation4], 1
    %164 = vsyncpa [#allocation5], 1

</llo_original>
